<compile_context>
chip_gen: v5e
topology: v5e:2x2
jax: 0.10.0
libtpu: 0.0.40
codegen_flags: <defaults>
</compile_context>

<pallas_src>
import numpy as np
import jax
import jax.numpy as jnp
from jax.experimental import pallas as pl
from jax.experimental.pallas import tpu as pltpu

# ----------------------- synthetic (small) SMPL dims -----------------------
BATCH = 2
N_VERTS = 128                       # real SMPL: 6890 (pad to 6912)
N_JOINTS = 24                       # SMPL kinematic joints
N_BETAS = 10
N_POSE_BASIS = (N_JOINTS - 1) * 9   # 207
N_FEAT = N_BETAS + N_POSE_BASIS     # 217 (combined blend feature)
N_EXTRA_VERT_JOINTS = 21            # VertexJointSelector extra joints
J_EXTRA = 9
J_COCOPLUS = 19
J_H36M = 17
N_REG = J_EXTRA + J_COCOPLUS + J_H36M   # 45 stacked regressor rows

SMPL_PARENTS = np.array(
    [-1, 0, 0, 0, 1, 2, 3, 4, 5, 6, 7, 8, 9, 9, 9, 12, 13, 14, 16, 17, 18,
     19, 20, 21], dtype=np.int32)

EXTRA_VERT_IDXS = jnp.array(np.arange(N_EXTRA_VERT_JOINTS) * 6 + 1,
                            dtype=jnp.int32)   # deterministic vertex picks


# ------------------------------ Pallas kernel -------------------------------

def _lbs_fused_kernel(gender_ref, feat_ref, a_ref, vt_ref, dirs_ref, lbsw_ref,
                      reg_ref, verts_ref, regj_ref, vp_ref):
    """Per (sample, V-tile): fused shape+pose blend, skinning, stacked regression.

    Layouts (lane-dense, V on lanes):
      feat_ref  : (1, 1, 217)       bf16 [betas | pose_feature]
      a_ref     : (1, 12, J)        f32 top-3x4 transforms, column-major (c*3+d, j)
      vt_ref    : (1, 3, TV)        f32 gender-selected v_template^T tile
      dirs_ref  : (1, 3, 217, TV)   bf16 gender-selected [shapedirs|posedirs] tile
      lbsw_ref  : (1, J, TV)        f32 gender-selected lbs_weights^T tile
      reg_ref   : (TV, 45)          f32 stacked [extra;cocoplus;h36m] regressor^T tile
      verts_ref : (1, 3, TV)        f32 output vertices^T tile
      regj_ref  : (1, 3, 45)        f32 accumulator across V tiles (resident block)
      vp_ref    : (3, TV)           f32 VMEM scratch (v_posed)
    """
    vt_idx = pl.program_id(1)
    feat = feat_ref[0]                                    # (1, 217) bf16

    # shape+pose blendshapes: one bf16 MXU matmul per coordinate, f32 accumulate,
    # written straight into scratch rows (no concatenate relayout).
    for d in range(3):
        vp_ref[d:d + 1, :] = vt_ref[0, d:d + 1, :] + jnp.dot(
            feat, dirs_ref[0, d], preferred_element_type=jnp.float32)
    vp = vp_ref[...]                                      # (3, TV)

    # per-vertex top-3x4 transforms; T[c*3:(c+1)*3] is column c as a (3, TV) slab.
    T = jnp.dot(a_ref[0], lbsw_ref[0],
                preferred_element_type=jnp.float32)       # (12, TV)

    # skinning: 4 slab FMAs, v_posed rows broadcast over sublanes (homogeneous 1).
    verts = (T[0:3] * vp[0:1] + T[3:6] * vp[1:2]
             + T[6:9] * vp[2:3] + T[9:12])                # (3, TV)
    verts_ref[0] = verts

    # stacked extra/cocoplus/h36m regression, accumulated across V tiles in the
    # resident output block (V axis is innermost + "arbitrary").
    @pl.when(vt_idx == 0)
    def _():
        regj_ref[...] = jnp.zeros_like(regj_ref)
    regj_ref[0] += jnp.dot(verts, reg_ref[...],
                           preferred_element_type=jnp.float32)   # (3, 45)


# ------------------------------ kernel wrapper ------------------------------

def lbs_fused(gender, feat, a_ct, gparams, reg_T, *, tile_v=None):
    """-> verts^T (B,3,V) f32, stacked regressed joints^T (B,3,45) f32."""
    B = feat.shape[0]
    V = gparams['v_template_T'].shape[-1]
    NR = reg_T.shape[-1]
    if tile_v is None:
        tile_v = min(V, 2048)        # fits double-buffered in 16 MiB scoped VMEM
    assert V % tile_v == 0 and tile_v % 128 == 0, "pad V to a multiple of 128"
    n_vt = V // tile_v

    grid_spec = pltpu.PrefetchScalarGridSpec(
        num_scalar_prefetch=1,
        grid=(B, n_vt),              # V tiles innermost (regression reduction)
        in_specs=[
            pl.BlockSpec((1, 1, N_FEAT), lambda b, v, g: (b, 0, 0)),
            pl.BlockSpec((1, 12, N_JOINTS), lambda b, v, g: (b, 0, 0)),
            pl.BlockSpec((1, 3, tile_v), lambda b, v, g: (g[b], 0, v)),
            pl.BlockSpec((1, 3, N_FEAT, tile_v), lambda b, v, g: (g[b], 0, 0, v)),
            pl.BlockSpec((1, N_JOINTS, tile_v), lambda b, v, g: (g[b], 0, v)),
            pl.BlockSpec((tile_v, NR), lambda b, v, g: (v, 0)),
        ],
        out_specs=[
            pl.BlockSpec((1, 3, tile_v), lambda b, v, g: (b, 0, v)),
            pl.BlockSpec((1, 3, NR), lambda b, v, g: (b, 0, 0)),
        ],
        scratch_shapes=[pltpu.VMEM((3, tile_v), jnp.float32)],
    )
    return pl.pallas_call(
        _lbs_fused_kernel,
        grid_spec=grid_spec,
        out_shape=(jax.ShapeDtypeStruct((B, 3, V), jnp.float32),
                   jax.ShapeDtypeStruct((B, 3, NR), jnp.float32)),
        compiler_params=pltpu.CompilerParams(
            dimension_semantics=("parallel", "arbitrary"),
            vmem_limit_bytes=24 * 1024 * 1024),
    )(gender, feat, a_ct, gparams['v_template_T'], gparams['blend_dirs'],
      gparams['lbs_weights_T'], reg_T)


# ------------------------------ JAX glue (LBS) ------------------------------

def batch_rodrigues(rot_vecs):
    """Axis-angle [N,3] -> rotation matrices [N,3,3] (matches smplx)."""
    angle = jnp.linalg.norm(rot_vecs + 1e-8, axis=1, keepdims=True)   # [N,1]
    rot_dir = rot_vecs / angle
    cos = jnp.cos(angle)[:, None]                                     # [N,1,1]
    sin = jnp.sin(angle)[:, None]
    rx, ry, rz = rot_dir[:, 0], rot_dir[:, 1], rot_dir[:, 2]
    zeros = jnp.zeros_like(rx)
    K = jnp.stack([zeros, -rz, ry, rz, zeros, -rx, -ry, rx, zeros],
                  axis=1).reshape(-1, 3, 3)
    ident = jnp.eye(3, dtype=jnp.float32)[None]
    return ident + sin * K + (1.0 - cos) * jnp.matmul(K, K)


def batch_rigid_transform(rot_mats, joints, parents):
    """rot_mats [B,N,3,3], joints [B,N,3] -> posed joints [B,N,3], rel transforms [B,N,4,4]."""
    B, N = joints.shape[:2]
    joints_e = joints[..., None]                                      # [B,N,3,1]
    rel_joints = jnp.concatenate(
        [joints_e[:, :1], joints_e[:, 1:] - joints_e[:, parents[1:]]], axis=1)
    top = jnp.concatenate([rot_mats, rel_joints], axis=-1)            # [B,N,3,4]
    bottom = jnp.broadcast_to(jnp.array([0., 0., 0., 1.], jnp.float32),
                              (B, N, 1, 4))
    transforms_mat = jnp.concatenate([top, bottom], axis=-2)          # [B,N,4,4]

    # statically unrolled kinematic chain (23 tiny 4x4 matmuls, no dynamic slices)
    chain = [transforms_mat[:, 0]]
    for i in range(1, N):
        chain.append(jnp.matmul(chain[int(parents[i])], transforms_mat[:, i]))
    transforms = jnp.stack(chain, axis=1)                             # [B,N,4,4]

    posed_joints = transforms[:, :, :3, 3]
    joints_homogen = jnp.concatenate(
        [joints_e, jnp.zeros((B, N, 1, 1), jnp.float32)], axis=2)     # [B,N,4,1]
    init_bone = jnp.matmul(transforms, joints_homogen)
    init_bone = jnp.pad(init_bone, ((0, 0), (0, 0), (0, 0), (3, 0)))
    return posed_joints, transforms - init_bone


# ------------------------------ parameter setup ------------------------------

def make_smpl_params(key):
    ks = jax.random.split(key, 5)
    return dict(
        v_template=jax.random.normal(ks[0], (N_VERTS, 3), jnp.float32) * 0.5,
        shapedirs=jax.random.normal(ks[1], (N_VERTS, 3, N_BETAS), jnp.float32) * 0.01,
        posedirs=jax.random.normal(ks[2], (N_POSE_BASIS, N_VERTS * 3), jnp.float32) * 0.01,
        J_regressor=jax.nn.softmax(
            jax.random.normal(ks[3], (N_JOINTS, N_VERTS), jnp.float32), axis=-1),
        lbs_weights=jax.nn.softmax(
            jax.random.normal(ks[4], (N_VERTS, N_JOINTS), jnp.float32) * 2.0, axis=-1),
    )


def prepare_gendered(male, female):
    """Lane-dense layouts, combined bf16 blend dirs, folded joint regressors;
    male/female stacked on a leading gender axis."""
    def prep(p):
        V = p['v_template'].shape[0]
        shapedirs_dV = jnp.transpose(p['shapedirs'], (1, 2, 0))               # (3,NB,V)
        posedirs_dV = jnp.transpose(
            p['posedirs'].reshape(N_POSE_BASIS, V, 3), (2, 0, 1))             # (3,207,V)
        blend_dirs = jnp.concatenate([shapedirs_dV, posedirs_dV], axis=1)     # (3,217,V)
        return dict(
            v_template_T=jnp.transpose(p['v_template'], (1, 0)).astype(jnp.float32),
            blend_dirs=blend_dirs.astype(jnp.bfloat16),                       # bf16 weights
            lbs_weights_T=jnp.transpose(p['lbs_weights'], (1, 0)).astype(jnp.float32),
            # folded 24-joint rest regression (tiny; done in plain JAX)
            j_template=jnp.dot(p['J_regressor'], p['v_template']),            # (24,3)
            j_shapedirs=jnp.einsum('jv,vkn->jkn',
                                   p['J_regressor'], p['shapedirs']),         # (24,3,NB)
        )
    pm, pf = prep(male), prep(female)
    return jax.tree_util.tree_map(lambda a, b: jnp.stack([a, b], axis=0), pm, pf)


# ------------------------------- forward pass --------------------------------

def smpl_forward(buffers, gender, betas, body_pose, global_orient):
    """Extended SMPL forward: per-sample gender-selected LBS + extra regressors."""
    B = betas.shape[0]
    gp = buffers['gendered']
    reg_T = buffers['reg_stacked_T']                      # (V, 45)
    gender = gender.astype(jnp.int32)

    # 1) 24 kinematic rest joints via folded regressors (tiny JAX matmuls)
    jt = gp['j_template'][gender]                         # (B, 24, 3)
    jsd = gp['j_shapedirs'][gender]                       # (B, 24, 3, NB)
    J = jt + jnp.einsum('bjkn,bn->bjk', jsd, betas)       # == J_reg @ v_shaped

    # 2) rotations + kinematic chain (plain JAX glue)
    full_pose = jnp.concatenate([global_orient, body_pose], axis=1)   # (B, 72)
    rot_mats = batch_rodrigues(full_pose.reshape(-1, 3)).reshape(B, N_JOINTS, 3, 3)
    pose_feature = (rot_mats[:, 1:] - jnp.eye(3, dtype=jnp.float32)
                    ).reshape(B, N_POSE_BASIS)
    J_transformed, A = batch_rigid_transform(rot_mats, J, SMPL_PARENTS)

    # combined blend feature (bf16 matmul operand) and column-major top-3x4 transforms
    feat = jnp.concatenate([betas, pose_feature], axis=1
                           ).astype(jnp.bfloat16)[:, None, :]         # (B, 1, 217)
    A_ct = jnp.transpose(A[:, :, :3, :], (0, 3, 2, 1)
                         ).reshape(B, 12, N_JOINTS).astype(jnp.float32)  # (B, 12, 24)

    # 3) sort batch by gender so consecutive grid steps (and each v7x core's
    #    contiguous span) reuse the gender-selected weight blocks; unsort after.
    order = jnp.argsort(gender)
    inv = jnp.argsort(order)
    verts_T_s, regj_T_s = lbs_fused(gender[order], feat[order], A_ct[order],
                                    gp, reg_T)
    vertices = jnp.transpose(verts_T_s[inv], (0, 2, 1))   # (B, V, 3)
    reg_joints = jnp.transpose(regj_T_s[inv], (0, 2, 1))  # (B, 45, 3)

    # 4) VertexJointSelector + final joint concat (order: kinematic, vert-picked,
    #    extra, cocoplus, h36m — matches the reference module)
    extra_verts = vertices[:, EXTRA_VERT_IDXS]            # (B, 21, 3)
    all_joints = jnp.concatenate([J_transformed, extra_verts, reg_joints], axis=1)

    return dict(vertices=vertices, global_orient=global_orient,
                body_pose=body_pose, joints=all_joints, betas=betas,
                full_pose=None)


# ------------------------------------ main -----------------------------------

if __name__ == "__main__":
    key = jax.random.PRNGKey(0)
    kp, kin = jax.random.split(key)
    km, kf, ke, kc, kh = jax.random.split(kp, 5)

    male_raw = make_smpl_params(km)
    female_raw = make_smpl_params(kf)
    J_regressor_extra = jax.nn.softmax(
        jax.random.normal(ke, (J_EXTRA, N_VERTS), jnp.float32), axis=-1)
    J_regressor_cocoplus = jax.nn.softmax(
        jax.random.normal(kc, (J_COCOPLUS, N_VERTS), jnp.float32), axis=-1)
    J_regressor_h36m = jax.nn.softmax(
        jax.random.normal(kh, (J_H36M, N_VERTS), jnp.float32), axis=-1)

    buffers = {
        'gendered': prepare_gendered(male_raw, female_raw),
        # stacked [extra; cocoplus; h36m] regressor, transposed to (V, 45), f32
        'reg_stacked_T': jnp.transpose(
            jnp.concatenate([J_regressor_extra, J_regressor_cocoplus,
                             J_regressor_h36m], axis=0), (1, 0)),
    }

    k1, k2, k3 = jax.random.split(kin, 3)
    betas = jax.random.normal(k1, (BATCH, N_BETAS), jnp.float32) * 0.5
    body_pose = jax.random.normal(k2, (BATCH, (N_JOINTS - 1) * 3), jnp.float32) * 0.2
    global_orient = jax.random.normal(k3, (BATCH, 3), jnp.float32) * 0.2
    gender = jnp.array([0, 1], dtype=jnp.int32)   # 0 = male, 1 = female

    fwd = jax.jit(lambda g, b, p, go: smpl_forward(buffers, g, b, p, go))
    out = fwd(gender, betas, body_pose, global_orient)
    jax.block_until_ready((out['vertices'], out['joints']))

    assert out['vertices'].shape == (BATCH, N_VERTS, 3)
    assert out['joints'].shape == (
        BATCH, N_JOINTS + N_EXTRA_VERT_JOINTS + J_EXTRA + J_COCOPLUS + J_H36M, 3)
    assert out['betas'].shape == (BATCH, N_BETAS)
    assert out['full_pose'] is None
    print("KERNEL_OK")
</pallas_src>

<mosaic_0001>
module attributes {stable_mosaic.version = 11 : i64} {
  func.func @_lbs_fused_kernel(%arg0: i32, %arg1: i32, %arg2: memref<2xi32, #tpu.memory_space<smem>>, %arg3: memref<1x1x217xbf16, #tpu.memory_space<vmem>>, %arg4: memref<1x12x24xf32, #tpu.memory_space<vmem>>, %arg5: memref<1x3x128xf32, #tpu.memory_space<vmem>>, %arg6: memref<1x3x217x128xbf16, #tpu.memory_space<vmem>>, %arg7: memref<1x24x128xf32, #tpu.memory_space<vmem>>, %arg8: memref<128x45xf32, #tpu.memory_space<vmem>>, %arg9: memref<1x3x128xf32, #tpu.memory_space<vmem>>, %arg10: memref<1x3x45xf32, #tpu.memory_space<vmem>>, %arg11: memref<3x128xf32, #tpu.memory_space<vmem>>) attributes {dimension_semantics = [#tpu.dimension_semantics<parallel>, #tpu.dimension_semantics<arbitrary>], iteration_bounds = array<i64: 2, 1>, scalar_prefetch = 1 : i64, scratch_operands = 1 : i64, tpu.core_type = #tpu.core_type<tc>, window_params = [{transform_indices = @transform_0, window_bounds = array<i64: 1, 1, 217>}, {transform_indices = @transform_1, window_bounds = array<i64: 1, 12, 24>}, {transform_indices = @transform_2, window_bounds = array<i64: 1, 3, 128>}, {transform_indices = @transform_3, window_bounds = array<i64: 1, 3, 217, 128>}, {transform_indices = @transform_4, window_bounds = array<i64: 1, 24, 128>}, {transform_indices = @transform_5, window_bounds = array<i64: 128, 45>}, {transform_indices = @transform_6, window_bounds = array<i64: 1, 3, 128>}, {transform_indices = @transform_7, window_bounds = array<i64: 1, 3, 45>}]} {
    %c0 = arith.constant 0 : index
    %c0_0 = arith.constant 0 : index
    %c0_1 = arith.constant 0 : index
    %0 = vector.load %arg3[%c0, %c0_0, %c0_1] : memref<1x1x217xbf16, #tpu.memory_space<vmem>>, vector<1x1x217xbf16>
    %1 = vector.shape_cast %0 : vector<1x1x217xbf16> to vector<1x217xbf16>
    %c0_2 = arith.constant 0 : index
    %c0_3 = arith.constant 0 : index
    %c0_4 = arith.constant 0 : index
    %2 = vector.load %arg5[%c0_2, %c0_3, %c0_4] : memref<1x3x128xf32, #tpu.memory_space<vmem>>, vector<1x1x128xf32>
    %3 = vector.shape_cast %2 : vector<1x1x128xf32> to vector<1x128xf32>
    %c0_5 = arith.constant 0 : index
    %c0_6 = arith.constant 0 : index
    %c0_7 = arith.constant 0 : index
    %c0_8 = arith.constant 0 : index
    %4 = vector.load %arg6[%c0_5, %c0_6, %c0_7, %c0_8] : memref<1x3x217x128xbf16, #tpu.memory_space<vmem>>, vector<1x1x217x128xbf16>
    %5 = vector.shape_cast %4 : vector<1x1x217x128xbf16> to vector<217x128xbf16>
    %cst = arith.constant dense<0.000000e+00> : vector<1x128xf32>
    %6 = tpu.matmul %1, %5, %cst {dimension_numbers = #tpu.dot_dimension_numbers<[1], [0], [0], [1], [0, 0, 1, 1], [], []>} : vector<1x217xbf16>, vector<217x128xbf16>, vector<1x128xf32> -> vector<1x128xf32>
    %7 = arith.addf %3, %6 : vector<1x128xf32>
    %c0_9 = arith.constant 0 : index
    %c0_10 = arith.constant 0 : index
    %8 = vector.load %arg11[%c0_9, %c0_10] : memref<3x128xf32, #tpu.memory_space<vmem>>, vector<1x128xf32>
    tpu.vector_store %arg11[%c0_9, %c0_10], %7 {strides = array<i32>} : memref<3x128xf32, #tpu.memory_space<vmem>>, vector<1x128xf32>,
    %c0_11 = arith.constant 0 : index
    %c1 = arith.constant 1 : index
    %c0_12 = arith.constant 0 : index
    %9 = vector.load %arg5[%c0_11, %c1, %c0_12] : memref<1x3x128xf32, #tpu.memory_space<vmem>>, vector<1x1x128xf32>
    %10 = vector.shape_cast %9 : vector<1x1x128xf32> to vector<1x128xf32>
    %c0_13 = arith.constant 0 : index
    %c1_14 = arith.constant 1 : index
    %c0_15 = arith.constant 0 : index
    %c0_16 = arith.constant 0 : index
    %11 = vector.load %arg6[%c0_13, %c1_14, %c0_15, %c0_16] : memref<1x3x217x128xbf16, #tpu.memory_space<vmem>>, vector<1x1x217x128xbf16>
    %12 = vector.shape_cast %11 : vector<1x1x217x128xbf16> to vector<217x128xbf16>
    %cst_17 = arith.constant dense<0.000000e+00> : vector<1x128xf32>
    %13 = tpu.matmul %1, %12, %cst_17 {dimension_numbers = #tpu.dot_dimension_numbers<[1], [0], [0], [1], [0, 0, 1, 1], [], []>} : vector<1x217xbf16>, vector<217x128xbf16>, vector<1x128xf32> -> vector<1x128xf32>
    %14 = arith.addf %10, %13 : vector<1x128xf32>
    %c1_18 = arith.constant 1 : index
    %c0_19 = arith.constant 0 : index
    %15 = vector.load %arg11[%c1_18, %c0_19] : memref<3x128xf32, #tpu.memory_space<vmem>>, vector<1x128xf32>
    tpu.vector_store %arg11[%c1_18, %c0_19], %14 {strides = array<i32>} : memref<3x128xf32, #tpu.memory_space<vmem>>, vector<1x128xf32>,
    %c0_20 = arith.constant 0 : index
    %c2 = arith.constant 2 : index
    %c0_21 = arith.constant 0 : index
    %16 = vector.load %arg5[%c0_20, %c2, %c0_21] : memref<1x3x128xf32, #tpu.memory_space<vmem>>, vector<1x1x128xf32>
    %17 = vector.shape_cast %16 : vector<1x1x128xf32> to vector<1x128xf32>
    %c0_22 = arith.constant 0 : index
    %c2_23 = arith.constant 2 : index
    %c0_24 = arith.constant 0 : index
    %c0_25 = arith.constant 0 : index
    %18 = vector.load %arg6[%c0_22, %c2_23, %c0_24, %c0_25] : memref<1x3x217x128xbf16, #tpu.memory_space<vmem>>, vector<1x1x217x128xbf16>
    %19 = vector.shape_cast %18 : vector<1x1x217x128xbf16> to vector<217x128xbf16>
    %cst_26 = arith.constant dense<0.000000e+00> : vector<1x128xf32>
    %20 = tpu.matmul %1, %19, %cst_26 {dimension_numbers = #tpu.dot_dimension_numbers<[1], [0], [0], [1], [0, 0, 1, 1], [], []>} : vector<1x217xbf16>, vector<217x128xbf16>, vector<1x128xf32> -> vector<1x128xf32>
    %21 = arith.addf %17, %20 : vector<1x128xf32>
    %c2_27 = arith.constant 2 : index
    %c0_28 = arith.constant 0 : index
    %22 = vector.load %arg11[%c2_27, %c0_28] : memref<3x128xf32, #tpu.memory_space<vmem>>, vector<1x128xf32>
    tpu.vector_store %arg11[%c2_27, %c0_28], %21 {strides = array<i32>} : memref<3x128xf32, #tpu.memory_space<vmem>>, vector<1x128xf32>,
    %c0_29 = arith.constant 0 : index
    %c0_30 = arith.constant 0 : index
    %23 = vector.load %arg11[%c0_29, %c0_30] : memref<3x128xf32, #tpu.memory_space<vmem>>, vector<3x128xf32>
    %c0_31 = arith.constant 0 : index
    %c0_32 = arith.constant 0 : index
    %c0_33 = arith.constant 0 : index
    %24 = vector.load %arg4[%c0_31, %c0_32, %c0_33] : memref<1x12x24xf32, #tpu.memory_space<vmem>>, vector<1x12x24xf32>
    %25 = vector.shape_cast %24 : vector<1x12x24xf32> to vector<12x24xf32>
    %c0_34 = arith.constant 0 : index
    %c0_35 = arith.constant 0 : index
    %c0_36 = arith.constant 0 : index
    %26 = vector.load %arg7[%c0_34, %c0_35, %c0_36] : memref<1x24x128xf32, #tpu.memory_space<vmem>>, vector<1x24x128xf32>
    %27 = vector.shape_cast %26 : vector<1x24x128xf32> to vector<24x128xf32>
    %cst_37 = arith.constant dense<0.000000e+00> : vector<12x128xf32>
    %28 = tpu.matmul %25, %27, %cst_37 {dimension_numbers = #tpu.dot_dimension_numbers<[1], [0], [0], [1], [0, 0, 1, 1], [], []>} : vector<12x24xf32>, vector<24x128xf32>, vector<12x128xf32> -> vector<12x128xf32>
    %29 = vector.extract_strided_slice %28 {offsets = [0, 0], sizes = [3, 128], strides = [1, 1]} : vector<12x128xf32> to vector<3x128xf32>
    %30 = vector.extract_strided_slice %23 {offsets = [0, 0], sizes = [1, 128], strides = [1, 1]} : vector<3x128xf32> to vector<1x128xf32>
    %31 = vector.broadcast %30 : vector<1x128xf32> to vector<3x128xf32>
    %32 = arith.mulf %29, %31 : vector<3x128xf32>
    %33 = vector.extract_strided_slice %28 {offsets = [3, 0], sizes = [3, 128], strides = [1, 1]} : vector<12x128xf32> to vector<3x128xf32>
    %34 = vector.extract_strided_slice %23 {offsets = [1, 0], sizes = [1, 128], strides = [1, 1]} : vector<3x128xf32> to vector<1x128xf32>
    %35 = vector.broadcast %34 : vector<1x128xf32> to vector<3x128xf32>
    %36 = arith.mulf %33, %35 : vector<3x128xf32>
    %37 = arith.addf %32, %36 : vector<3x128xf32>
    %38 = vector.extract_strided_slice %28 {offsets = [6, 0], sizes = [3, 128], strides = [1, 1]} : vector<12x128xf32> to vector<3x128xf32>
    %39 = vector.extract_strided_slice %23 {offsets = [2, 0], sizes = [1, 128], strides = [1, 1]} : vector<3x128xf32> to vector<1x128xf32>
    %40 = vector.broadcast %39 : vector<1x128xf32> to vector<3x128xf32>
    %41 = arith.mulf %38, %40 : vector<3x128xf32>
    %42 = arith.addf %37, %41 : vector<3x128xf32>
    %43 = vector.extract_strided_slice %28 {offsets = [9, 0], sizes = [3, 128], strides = [1, 1]} : vector<12x128xf32> to vector<3x128xf32>
    %44 = arith.addf %42, %43 : vector<3x128xf32>
    %c0_38 = arith.constant 0 : index
    %c0_39 = arith.constant 0 : index
    %c0_40 = arith.constant 0 : index
    %45 = vector.load %arg9[%c0_38, %c0_39, %c0_40] : memref<1x3x128xf32, #tpu.memory_space<vmem>>, vector<1x3x128xf32>
    %46 = vector.shape_cast %45 : vector<1x3x128xf32> to vector<3x128xf32>
    %47 = vector.shape_cast %44 : vector<3x128xf32> to vector<1x3x128xf32>
    tpu.vector_store %arg9[%c0_38, %c0_39, %c0_40], %47 {strides = array<i32>} : memref<1x3x128xf32, #tpu.memory_space<vmem>>, vector<1x3x128xf32>,
    %c0_i32 = arith.constant 0 : i32
    %48 = arith.cmpi eq, %arg1, %c0_i32 : i32
    %49 = arith.extui %48 : i1 to i32
    %c0_i32_41 = arith.constant 0 : i32
    %50 = arith.cmpi ne, %49, %c0_i32_41 : i32
    scf.if %50 {
      %cst_51 = arith.constant 0.000000e+00 : f32
      %59 = vector.broadcast %cst_51 : f32 to vector<1x3x45xf32>
      %c0_52 = arith.constant 0 : index
      %c0_53 = arith.constant 0 : index
      %c0_54 = arith.constant 0 : index
      %60 = vector.load %arg10[%c0_52, %c0_53, %c0_54] : memref<1x3x45xf32, #tpu.memory_space<vmem>>, vector<1x3x45xf32>
      tpu.vector_store %arg10[%c0_52, %c0_53, %c0_54], %59 {strides = array<i32>} : memref<1x3x45xf32, #tpu.memory_space<vmem>>, vector<1x3x45xf32>,
    } else {
    }
    %c0_42 = arith.constant 0 : index
    %c0_43 = arith.constant 0 : index
    %c0_44 = arith.constant 0 : index
    %51 = vector.load %arg10[%c0_42, %c0_43, %c0_44] : memref<1x3x45xf32, #tpu.memory_space<vmem>>, vector<1x3x45xf32>
    %52 = vector.shape_cast %51 : vector<1x3x45xf32> to vector<3x45xf32>
    %c0_45 = arith.constant 0 : index
    %c0_46 = arith.constant 0 : index
    %53 = vector.load %arg8[%c0_45, %c0_46] : memref<128x45xf32, #tpu.memory_space<vmem>>, vector<128x45xf32>
    %cst_47 = arith.constant dense<0.000000e+00> : vector<3x45xf32>
    %54 = tpu.matmul %44, %53, %cst_47 {dimension_numbers = #tpu.dot_dimension_numbers<[1], [0], [0], [1], [0, 0, 1, 1], [], []>} : vector<3x128xf32>, vector<128x45xf32>, vector<3x45xf32> -> vector<3x45xf32>
    %55 = arith.addf %52, %54 : vector<3x45xf32>
    %c0_48 = arith.constant 0 : index
    %c0_49 = arith.constant 0 : index
    %c0_50 = arith.constant 0 : index
    %56 = vector.load %arg10[%c0_48, %c0_49, %c0_50] : memref<1x3x45xf32, #tpu.memory_space<vmem>>, vector<1x3x45xf32>
    %57 = vector.shape_cast %56 : vector<1x3x45xf32> to vector<3x45xf32>
    %58 = vector.shape_cast %55 : vector<3x45xf32> to vector<1x3x45xf32>
    tpu.vector_store %arg10[%c0_48, %c0_49, %c0_50], %58 {strides = array<i32>} : memref<1x3x45xf32, #tpu.memory_space<vmem>>, vector<1x3x45xf32>,
    return
  }
  func.func @transform_0(%arg0: i32, %arg1: i32, %arg2: memref<2xi32, #tpu.memory_space<smem>>) -> (i32, i32, i32) {
    %c0_i32 = arith.constant 0 : i32
    %c0_i32_0 = arith.constant 0 : i32
    %c0_i32_1 = arith.constant 0 : i32
    return %arg0, %c0_i32, %c0_i32_0 : i32, i32, i32
  }
  func.func @transform_1(%arg0: i32, %arg1: i32, %arg2: memref<2xi32, #tpu.memory_space<smem>>) -> (i32, i32, i32) {
    %c0_i32 = arith.constant 0 : i32
    %c0_i32_0 = arith.constant 0 : i32
    %c0_i32_1 = arith.constant 0 : i32
    return %arg0, %c0_i32, %c0_i32_0 : i32, i32, i32
  }
  func.func @transform_2(%arg0: i32, %arg1: i32, %arg2: memref<2xi32, #tpu.memory_space<smem>>) -> (i32, i32, i32) {
    %0 = arith.index_cast %arg0 : i32 to index
    %1 = memref.load %arg2[%0] : memref<2xi32, #tpu.memory_space<smem>>
    %c0_i32 = arith.constant 0 : i32
    %c0_i32_0 = arith.constant 0 : i32
    return %1, %c0_i32, %arg1 : i32, i32, i32
  }
  func.func @transform_3(%arg0: i32, %arg1: i32, %arg2: memref<2xi32, #tpu.memory_space<smem>>) -> (i32, i32, i32, i32) {
    %0 = arith.index_cast %arg0 : i32 to index
    %1 = memref.load %arg2[%0] : memref<2xi32, #tpu.memory_space<smem>>
    %c0_i32 = arith.constant 0 : i32
    %c0_i32_0 = arith.constant 0 : i32
    %c0_i32_1 = arith.constant 0 : i32
    return %1, %c0_i32, %c0_i32_0, %arg1 : i32, i32, i32, i32
  }
  func.func @transform_4(%arg0: i32, %arg1: i32, %arg2: memref<2xi32, #tpu.memory_space<smem>>) -> (i32, i32, i32) {
    %0 = arith.index_cast %arg0 : i32 to index
    %1 = memref.load %arg2[%0] : memref<2xi32, #tpu.memory_space<smem>>
    %c0_i32 = arith.constant 0 : i32
    %c0_i32_0 = arith.constant 0 : i32
    return %1, %c0_i32, %arg1 : i32, i32, i32
  }
  func.func @transform_5(%arg0: i32, %arg1: i32, %arg2: memref<2xi32, #tpu.memory_space<smem>>) -> (i32, i32) {
    %c0_i32 = arith.constant 0 : i32
    %c0_i32_0 = arith.constant 0 : i32
    return %arg1, %c0_i32 : i32, i32
  }
  func.func @transform_6(%arg0: i32, %arg1: i32, %arg2: memref<2xi32, #tpu.memory_space<smem>>) -> (i32, i32, i32) {
    %c0_i32 = arith.constant 0 : i32
    %c0_i32_0 = arith.constant 0 : i32
    return %arg0, %c0_i32, %arg1 : i32, i32, i32
  }
  func.func @transform_7(%arg0: i32, %arg1: i32, %arg2: memref<2xi32, #tpu.memory_space<smem>>) -> (i32, i32, i32) {
    %c0_i32 = arith.constant 0 : i32
    %c0_i32_0 = arith.constant 0 : i32
    %c0_i32_1 = arith.constant 0 : i32
    return %arg0, %c0_i32, %c0_i32_0 : i32, i32, i32
  }
}

</mosaic_0001>

<llo_original>
// kernel: _lambda_.1
$region0: #{_lambda_.1}
  #allocation0 [shape = 'u32[]', space=smem, size = 0x4, offset = 0x4, fixed_abs, tag = 'smem constant byte address 0x4 - core index']
  #allocation1 [shape = 'u32[72,128]{1,0:T(1,128)}', space=vmem, size = 0x9000, scoped, tag = 'internal scratch']
  #allocation2 [shape = 'f32[3,128]{1,0:T(4,128)}', space=vmem, size = 0x800, scoped, tag = 'scratch operand']
  #allocation3 [shape = 's32[1]{0}', space=sflag, size = 0x4, scoped, tag = 'scoped memory for _lambda_.1']
  #allocation4 [shape = 'u8[512]{0}', space=smem, size = 0x200, scoped, tag = 'prefetched SMEM operand 0']
  %s0 = inlined_call_operand.vmem [shape: s32[2], index: 0, kind: input, shape index: {}]
  %s1 = inlined_call_operand.vmem [shape: bf16[2,1,217], index: 1, kind: input, shape index: {}]
  %s2 = inlined_call_operand.vmem [shape: f32[2,12,24], index: 2, kind: input, shape index: {}]
  %s3 = inlined_call_operand.vmem [shape: f32[2,3,128], index: 3, kind: input, shape index: {}]
  %s4 = inlined_call_operand.vmem [shape: bf16[2,3,217,128], index: 4, kind: input, shape index: {}]
  %s5 = inlined_call_operand.vmem [shape: f32[2,24,128], index: 5, kind: input, shape index: {}]
  %s6 = inlined_call_operand.vmem [shape: f32[128,45], index: 6, kind: input, shape index: {}]
  %s7 = inlined_call_operand.vmem [shape: f32[2,3,128], index: 7, kind: output, shape index: {0}]
  %s8 = inlined_call_operand.vmem [shape: f32[2,3,45], index: 8, kind: output, shape index: {1}]
  %9 = xla_tuple %s7, %s8
  %s10 = sld [smem:[#allocation0]]
  $region69: #{_lambda_.1} parent=0
    _
  %s12 = ssub.s32 1, %s10
  %s13 = scalar_select 0, %s12, %s10
  %s15 = sshll.u32 %s0, 4
  %s16 = int_to_ptr.vmem [resolvable:$true] %s15
  %18 = dma.vmem_to_smem %s16, 16, [#allocation4], [#allocation3]
  %20 = dma.done [#allocation3], 16
  %21 = sfence
  loop: start=0, step=1, limit=4
  $region2: #{_lambda_.1} parent=0 // loop_pre_header
    _
  $region3: #{_lambda_.1} parent=0 // loop_header
    %s23 = sphi 0, %s27
    %p24 = scmp.ge.s32.totalorder %s23, 4
    %s30 = sphi 0, %s42
    %s31 = sphi 0, %s38
    %s32 = sphi 0, %s30
    %s33 = sphi 0, %s31
    %s34 = sphi 0, %s32
    %s35 = sphi 0, %s33
    %s45 = sphi 0, %s47
    %s48 = sphi 0, %s45
    %s49 = sphi 0, %s48
    %s65 = sphi 0, %s49
    %s71 = sphi 0, %s73
    %s74 = sphi 0, %s71
    %s75 = sphi 0, %s74
    %s91 = sphi 0, %s75
    %s101 = sphi 0, %s103
    %s104 = sphi 0, %s101
    %s105 = sphi 0, %s104
    %s121 = sphi 0, %s105
    %s131 = sphi 0, %s133
    %s134 = sphi 0, %s131
    %s135 = sphi 0, %s134
    %s151 = sphi 0, %s135
    %s161 = sphi 0, %s163
    %s164 = sphi 0, %s161
    %s165 = sphi 0, %s164
    %s181 = sphi 0, %s165
    %s187 = sphi 0, %s189
    %s190 = sphi 0, %s187
    %s191 = sphi 0, %s190
    %s207 = sphi 0, %s191
    %s215 = sphi 0, %s217
    %s218 = sphi 0, %s215
    %s219 = sphi 0, %s218
    %s235 = sphi 0, %s219
    %s241 = sphi 0, %s243
    %s244 = sphi 0, %s241
    %s245 = sphi 0, %s244
    %s261 = sphi 0, %s245
  $region4: #{_lambda_.1} parent=0 // loop_header_branch
    %26 = sbr.rel (%p24) target = $region8
  $region5: #{_lambda_.1} parent=0 // loop_body
    %s28 = ssub.s32 %s23, 1
    %s29 = ssub.s32 %s23, 2
    %s36 = sadd.s32 1, %s31
    %p37 = scmp.ge.s32.totalorder %s36, 1
    %s38 = scalar_select %p37, 0, %s36
    %s39 = sadd.s32 1, %s30
    %s40 = scalar_select %p37, %s39, %s30
    %p41 = scmp.ge.s32.totalorder %s40, 2
    %s42 = scalar_select %p41, 0, %s40
    %s43 = ssub.s32 %s30, %s42
    %p44 = scmp.eq.s32.totalorder %s43, 0
    %s46 = sadd.s32 %s45, 1
    %s47 = scalar_select %p44, %s45, %s46
    %p50 = pneg %p44
    %p51 = scmp.eq.s32.totalorder %s23, 1
    %p52 = por %p50, %p51
    %p53 = scmp.ne.s32.totalorder %s45, %s48
    %p54 = scmp.eq.s32.totalorder %s23, 0
    %p55 = por %p53, %p54
    %p56 = scmp.ne.s32.totalorder %s45, %s48
    %p57 = scmp.eq.s32.totalorder %s28, 1
    %p58 = por %p56, %p57
    %p59 = scmp.ne.s32.totalorder %s48, %s49
    %p60 = scmp.eq.s32.totalorder %s28, 0
    %p61 = por %p59, %p60
    %p62 = scmp.ne.s32.totalorder %s48, %s49
    %p63 = scmp.eq.s32.totalorder %s29, 1
    %p64 = por %p62, %p63
    %p66 = scmp.ne.s32.totalorder %s49, %s65
    %p67 = scmp.eq.s32.totalorder %s29, 0
    %p68 = por %p66, %p67
    %s69 = ssub.s32 %s30, %s42
    %p70 = scmp.eq.s32.totalorder %s69, 0
    %s72 = sadd.s32 %s71, 1
    %s73 = scalar_select %p70, %s71, %s72
    %p76 = pneg %p70
    %p77 = scmp.eq.s32.totalorder %s23, 1
    %p78 = por %p76, %p77
    %p79 = scmp.ne.s32.totalorder %s71, %s74
    %p80 = scmp.eq.s32.totalorder %s23, 0
    %p81 = por %p79, %p80
    %p82 = scmp.ne.s32.totalorder %s71, %s74
    %p83 = scmp.eq.s32.totalorder %s28, 1
    %p84 = por %p82, %p83
    %p85 = scmp.ne.s32.totalorder %s74, %s75
    %p86 = scmp.eq.s32.totalorder %s28, 0
    %p87 = por %p85, %p86
    %p88 = scmp.ne.s32.totalorder %s74, %s75
    %p89 = scmp.eq.s32.totalorder %s29, 1
    %p90 = por %p88, %p89
    %p92 = scmp.ne.s32.totalorder %s75, %s91
    %p93 = scmp.eq.s32.totalorder %s29, 0
    %p94 = por %p92, %p93
    %s95 = sld [smem:[#allocation4 + %s30]]
    %s96 = sld [smem:[#allocation4 + %s42]]
    %s97 = ssub.s32 %s95, %s96
    %s98 = ssub.s32 %s31, %s38
    %s99 = sor.u32 %s97, %s98
    %p100 = scmp.eq.s32.totalorder %s99, 0
    %s102 = sadd.s32 %s101, 1
    %s103 = scalar_select %p100, %s101, %s102
    %p106 = pneg %p100
    %p107 = scmp.eq.s32.totalorder %s23, 1
    %p108 = por %p106, %p107
    %p109 = scmp.ne.s32.totalorder %s101, %s104
    %p110 = scmp.eq.s32.totalorder %s23, 0
    %p111 = por %p109, %p110
    %p112 = scmp.ne.s32.totalorder %s101, %s104
    %p113 = scmp.eq.s32.totalorder %s28, 1
    %p114 = por %p112, %p113
    %p115 = scmp.ne.s32.totalorder %s104, %s105
    %p116 = scmp.eq.s32.totalorder %s28, 0
    %p117 = por %p115, %p116
    %p118 = scmp.ne.s32.totalorder %s104, %s105
    %p119 = scmp.eq.s32.totalorder %s29, 1
    %p120 = por %p118, %p119
    %p122 = scmp.ne.s32.totalorder %s105, %s121
    %p123 = scmp.eq.s32.totalorder %s29, 0
    %p124 = por %p122, %p123
    %s125 = sld [smem:[#allocation4 + %s30]]
    %s126 = sld [smem:[#allocation4 + %s42]]
    %s127 = ssub.s32 %s125, %s126
    %s128 = ssub.s32 %s31, %s38
    %s129 = sor.u32 %s127, %s128
    %p130 = scmp.eq.s32.totalorder %s129, 0
    %s132 = sadd.s32 %s131, 1
    %s133 = scalar_select %p130, %s131, %s132
    %p136 = pneg %p130
    %p137 = scmp.eq.s32.totalorder %s23, 1
    %p138 = por %p136, %p137
    %p139 = scmp.ne.s32.totalorder %s131, %s134
    %p140 = scmp.eq.s32.totalorder %s23, 0
    %p141 = por %p139, %p140
    %p142 = scmp.ne.s32.totalorder %s131, %s134
    %p143 = scmp.eq.s32.totalorder %s28, 1
    %p144 = por %p142, %p143
    %p145 = scmp.ne.s32.totalorder %s134, %s135
    %p146 = scmp.eq.s32.totalorder %s28, 0
    %p147 = por %p145, %p146
    %p148 = scmp.ne.s32.totalorder %s134, %s135
    %p149 = scmp.eq.s32.totalorder %s29, 1
    %p150 = por %p148, %p149
    %p152 = scmp.ne.s32.totalorder %s135, %s151
    %p153 = scmp.eq.s32.totalorder %s29, 0
    %p154 = por %p152, %p153
    %s155 = sld [smem:[#allocation4 + %s30]]
    %s156 = sld [smem:[#allocation4 + %s42]]
    %s157 = ssub.s32 %s155, %s156
    %s158 = ssub.s32 %s31, %s38
    %s159 = sor.u32 %s157, %s158
    %p160 = scmp.eq.s32.totalorder %s159, 0
    %s162 = sadd.s32 %s161, 1
    %s163 = scalar_select %p160, %s161, %s162
    %p166 = pneg %p160
    %p167 = scmp.eq.s32.totalorder %s23, 1
    %p168 = por %p166, %p167
    %p169 = scmp.ne.s32.totalorder %s161, %s164
    %p170 = scmp.eq.s32.totalorder %s23, 0
    %p171 = por %p169, %p170
    %p172 = scmp.ne.s32.totalorder %s161, %s164
    %p173 = scmp.eq.s32.totalorder %s28, 1
    %p174 = por %p172, %p173
    %p175 = scmp.ne.s32.totalorder %s164, %s165
    %p176 = scmp.eq.s32.totalorder %s28, 0
    %p177 = por %p175, %p176
    %p178 = scmp.ne.s32.totalorder %s164, %s165
    %p179 = scmp.eq.s32.totalorder %s29, 1
    %p180 = por %p178, %p179
    %p182 = scmp.ne.s32.totalorder %s165, %s181
    %p183 = scmp.eq.s32.totalorder %s29, 0
    %p184 = por %p182, %p183
    %s185 = ssub.s32 %s31, %s38
    %p186 = scmp.eq.s32.totalorder %s185, 0
    %s188 = sadd.s32 %s187, 1
    %s189 = scalar_select %p186, %s187, %s188
    %p192 = pneg %p186
    %p193 = scmp.eq.s32.totalorder %s23, 1
    %p194 = por %p192, %p193
    %p195 = scmp.ne.s32.totalorder %s187, %s190
    %p196 = scmp.eq.s32.totalorder %s23, 0
    %p197 = por %p195, %p196
    %p198 = scmp.ne.s32.totalorder %s187, %s190
    %p199 = scmp.eq.s32.totalorder %s28, 1
    %p200 = por %p198, %p199
    %p201 = scmp.ne.s32.totalorder %s190, %s191
    %p202 = scmp.eq.s32.totalorder %s28, 0
    %p203 = por %p201, %p202
    %p204 = scmp.ne.s32.totalorder %s190, %s191
    %p205 = scmp.eq.s32.totalorder %s29, 1
    %p206 = por %p204, %p205
    %p208 = scmp.ne.s32.totalorder %s191, %s207
    %p209 = scmp.eq.s32.totalorder %s29, 0
    %p210 = por %p208, %p209
    %s211 = ssub.s32 %s30, %s42
    %s212 = ssub.s32 %s31, %s38
    %s213 = sor.u32 %s211, %s212
    %p214 = scmp.eq.s32.totalorder %s213, 0
    %s216 = sadd.s32 %s215, 1
    %s217 = scalar_select %p214, %s215, %s216
    %p220 = pneg %p214
    %p221 = scmp.eq.s32.totalorder %s23, 1
    %p222 = por %p220, %p221
    %p223 = scmp.ne.s32.totalorder %s215, %s218
    %p224 = scmp.eq.s32.totalorder %s23, 0
    %p225 = por %p223, %p224
    %p226 = scmp.ne.s32.totalorder %s215, %s218
    %p227 = scmp.eq.s32.totalorder %s28, 1
    %p228 = por %p226, %p227
    %p229 = scmp.ne.s32.totalorder %s218, %s219
    %p230 = scmp.eq.s32.totalorder %s28, 0
    %p231 = por %p229, %p230
    %p232 = scmp.ne.s32.totalorder %s218, %s219
    %p233 = scmp.eq.s32.totalorder %s29, 1
    %p234 = por %p232, %p233
    %p236 = scmp.ne.s32.totalorder %s219, %s235
    %p237 = scmp.eq.s32.totalorder %s29, 0
    %p238 = por %p236, %p237
    %s239 = ssub.s32 %s30, %s42
    %p240 = scmp.eq.s32.totalorder %s239, 0
    %s242 = sadd.s32 %s241, 1
    %s243 = scalar_select %p240, %s241, %s242
    %p246 = pneg %p240
    %p247 = scmp.eq.s32.totalorder %s23, 1
    %p248 = por %p246, %p247
    %p249 = scmp.ne.s32.totalorder %s241, %s244
    %p250 = scmp.eq.s32.totalorder %s23, 0
    %p251 = por %p249, %p250
    %p252 = scmp.ne.s32.totalorder %s241, %s244
    %p253 = scmp.eq.s32.totalorder %s28, 1
    %p254 = por %p252, %p253
    %p255 = scmp.ne.s32.totalorder %s244, %s245
    %p256 = scmp.eq.s32.totalorder %s28, 0
    %p257 = por %p255, %p256
    %p258 = scmp.ne.s32.totalorder %s244, %s245
    %p259 = scmp.eq.s32.totalorder %s29, 1
    %p260 = por %p258, %p259
    %p262 = scmp.ne.s32.totalorder %s245, %s261
    %p263 = scmp.eq.s32.totalorder %s29, 0
    %p264 = por %p262, %p263
    %p265 = scmp.le.s32.totalorder 1, %s23
    %p266 = scmp.lt.s32.totalorder %s23, 3
    %p267 = pnand %p265, %p266
    %p268 = pneg %p267
    // Predicated region
    $region9: #{_lambda_.1} parent=5 // pred_check
      _
    $region10: #{_lambda_.1} parent=5 // pred_check_branch
      %270 = sbr.rel (%p267) target = $region12
    $region11: #{_lambda_.1} parent=5 // pred_region
      %s271 = ssub.s32 %s23, 1
      // Predicated region
      $region13: #{_lambda_.1} parent=11 // pred_check
        %p272 = pneg %p203
      $region14: #{_lambda_.1} parent=11 // pred_check_branch
        %274 = sbr.rel (%p272) target = $region16
      $region15: #{_lambda_.1} parent=11 // pred_region
        %s275 = smul.u32 16, %s33
        %p276 = scmp.lt.s32.totalorder %s275, 15
        %s277 = scalar_select %p276, %s275, 15
        %s278 = smul.addr %s277, 8
        %s279 = scalar_lea.vmem %s6, %s278
        %s280 = smul.u32 16, %s33
      $region16: #{_lambda_.1} parent=11 // pred_fallthru
        _
    $region12: #{_lambda_.1} parent=5 // pred_fallthru
      _
    %p281 = scmp.lt.s32.totalorder %s23, 2
    // Predicated region
    $region17: #{_lambda_.1} parent=5 // pred_check
      %p282 = pneg %p281
    $region18: #{_lambda_.1} parent=5 // pred_check_branch
      %284 = sbr.rel (%p282) target = $region20
    $region19: #{_lambda_.1} parent=5 // pred_region
      // Predicated region
      $region21: #{_lambda_.1} parent=19 // pred_check
        %p285 = pneg %p55
      $region22: #{_lambda_.1} parent=19 // pred_check_branch
        %287 = sbr.rel (%p285) target = $region24
      $region23: #{_lambda_.1} parent=19 // pred_region
        %p288 = scmp.lt.s32.totalorder %s30, 1
        %s289 = scalar_select %p288, %s30, 1
        %s290 = smul.addr %s289, 2
        %s291 = scalar_lea.vmem %s1, %s290
      $region24: #{_lambda_.1} parent=19 // pred_fallthru
        _
      // Predicated region
      $region25: #{_lambda_.1} parent=19 // pred_check
        %p292 = pneg %p81
      $region26: #{_lambda_.1} parent=19 // pred_check_branch
        %294 = sbr.rel (%p292) target = $region28
      $region27: #{_lambda_.1} parent=19 // pred_region
        %p295 = scmp.lt.s32.totalorder %s30, 1
        %s296 = scalar_select %p295, %s30, 1
        %s297 = smul.addr %s296, 2
        %s298 = smul.addr %s297, 8
        %s299 = scalar_lea.vmem %s2, %s298
      $region28: #{_lambda_.1} parent=19 // pred_fallthru
        _
      // Predicated region
      $region29: #{_lambda_.1} parent=19 // pred_check
        %p300 = pneg %p111
      $region30: #{_lambda_.1} parent=19 // pred_check_branch
        %302 = sbr.rel (%p300) target = $region32
      $region31: #{_lambda_.1} parent=19 // pred_region
        %s303 = sld [smem:[#allocation4 + %s30]]
        %p304 = scmp.lt.s32.totalorder %s303, 1
        %s305 = scalar_select %p304, %s303, 1
        %p306 = scmp.lt.s32.totalorder %s31, 0
        %s307 = scalar_select %p306, %s31, 0
        %s308 = sadd.s32 %s307, %s305
        %s309 = smul.addr %s308, 4
        %s310 = scalar_lea.vmem %s3, %s309
        %s311 = sld [smem:[#allocation4 + %s30]]
      $region32: #{_lambda_.1} parent=19 // pred_fallthru
        _
      // Predicated region
      $region33: #{_lambda_.1} parent=19 // pred_check
        %p312 = pneg %p141
      $region34: #{_lambda_.1} parent=19 // pred_check_branch
        %314 = sbr.rel (%p312) target = $region36
      $region35: #{_lambda_.1} parent=19 // pred_region
        %s315 = sld [smem:[#allocation4 + %s30]]
        %p316 = scmp.lt.s32.totalorder %s315, 1
        %s317 = scalar_select %p316, %s315, 1
        %p318 = scmp.lt.s32.totalorder %s31, 0
        %s319 = scalar_select %p318, %s31, 0
        %s320 = smul.addr %s317, 84
        %s321 = sadd.s32 %s319, %s320
        %s322 = smul.addr %s321, 4
        %s323 = scalar_lea.vmem %s4, %s322
        %s324 = sld [smem:[#allocation4 + %s30]]
      $region36: #{_lambda_.1} parent=19 // pred_fallthru
        _
      // Predicated region
      $region37: #{_lambda_.1} parent=19 // pred_check
        %p325 = pneg %p171
      $region38: #{_lambda_.1} parent=19 // pred_check_branch
        %327 = sbr.rel (%p325) target = $region40
      $region39: #{_lambda_.1} parent=19 // pred_region
        %s328 = sld [smem:[#allocation4 + %s30]]
        %p329 = scmp.lt.s32.totalorder %s328, 1
        %s330 = scalar_select %p329, %s328, 1
        %p331 = scmp.lt.s32.totalorder %s31, 0
        %s332 = scalar_select %p331, %s31, 0
        %s333 = smul.addr %s330, 3
        %s334 = sadd.s32 %s332, %s333
        %s335 = smul.addr %s334, 8
        %s336 = scalar_lea.vmem %s5, %s335
        %s337 = sld [smem:[#allocation4 + %s30]]
      $region40: #{_lambda_.1} parent=19 // pred_fallthru
        _
    $region20: #{_lambda_.1} parent=5 // pred_fallthru
      _
    %p338 = scmp.le.s32.totalorder 1, %s23
    %p339 = scmp.lt.s32.totalorder %s23, 3
    %p340 = pnand %p338, %p339
    %p341 = pneg %p340
    // Predicated region
    $region41: #{_lambda_.1} parent=5 // pred_check
      _
    $region42: #{_lambda_.1} parent=5 // pred_check_branch
      %343 = sbr.rel (%p340) target = $region44
    $region43: #{_lambda_.1} parent=5 // pred_region
      %s344 = ssub.s32 %s23, 1
      %p345 = scmp.lt.s32.totalorder %s32, 1
      %s346 = scalar_select %p345, %s32, 1
      %s347 = smul.addr %s346, 2
      %s348 = scalar_lea.vmem %s1, %s347
      %p349 = pneg %p61
      %p350 = pneg %p58
      %p351 = scmp.lt.s32.totalorder %s32, 1
      %s352 = scalar_select %p351, %s32, 1
      %s353 = smul.addr %s352, 2
      %s354 = smul.addr %s353, 8
      %s355 = scalar_lea.vmem %s2, %s354
      %p356 = pneg %p87
      %p357 = pneg %p84
      %s358 = sld [smem:[#allocation4 + %s32]]
      %p359 = scmp.lt.s32.totalorder %s358, 1
      %s360 = scalar_select %p359, %s358, 1
      %p361 = scmp.lt.s32.totalorder %s33, 0
      %s362 = scalar_select %p361, %s33, 0
      %s363 = sadd.s32 %s362, %s360
      %s364 = smul.addr %s363, 4
      %s365 = scalar_lea.vmem %s3, %s364
      %p366 = pneg %p117
      %p367 = pneg %p114
      %s368 = sld [smem:[#allocation4 + %s32]]
      %p369 = scmp.lt.s32.totalorder %s368, 1
      %s370 = scalar_select %p369, %s368, 1
      %p371 = scmp.lt.s32.totalorder %s33, 0
      %s372 = scalar_select %p371, %s33, 0
      %s373 = smul.addr %s370, 84
      %s374 = sadd.s32 %s372, %s373
      %s375 = smul.addr %s374, 4
      %s376 = scalar_lea.vmem %s4, %s375
      %p377 = pneg %p147
      %p378 = pneg %p144
      %s379 = sld [smem:[#allocation4 + %s32]]
      %p380 = scmp.lt.s32.totalorder %s379, 1
      %s381 = scalar_select %p380, %s379, 1
      %p382 = scmp.lt.s32.totalorder %s33, 0
      %s383 = scalar_select %p382, %s33, 0
      %s384 = smul.addr %s381, 3
      %s385 = sadd.s32 %s383, %s384
      %s386 = smul.addr %s385, 8
      %s387 = scalar_lea.vmem %s5, %s386
      %p388 = pneg %p177
      %p389 = pneg %p174
      %s390 = smul.u32 16, %s33
      %p391 = scmp.lt.s32.totalorder %s390, 15
      %s392 = scalar_select %p391, %s390, 15
      %s393 = smul.addr %s392, 8
      %s394 = scalar_lea.vmem %s6, %s393
      %p395 = pneg %p203
      %p396 = pneg %p200
      %p397 = pneg %p231
      %p398 = pneg %p228
      %p399 = scmp.lt.s32.totalorder %s32, 1
      %s400 = scalar_select %p399, %s32, 1
      %p401 = scmp.lt.s32.totalorder %s33, 0
      %s402 = scalar_select %p401, %s33, 0
      %s403 = sadd.s32 %s402, %s400
      %s404 = smul.addr %s403, 4
      %s405 = scalar_lea.vmem %s7, %s404
      %p406 = pneg %p257
      %p407 = pneg %p254
      %p408 = scmp.lt.s32.totalorder %s32, 1
      %s409 = scalar_select %p408, %s32, 1
      %s410 = smul.addr %s409, 4
      %s411 = scalar_lea.vmem %s8, %s410
      %p412 = scmp.lt.s32.totalorder %s32, 1
      %s413 = scalar_select %p412, %s32, 1
      %s414 = smul.addr %s413, 2
      %s415 = scalar_lea.vmem %s1, %s414
      %p416 = scmp.lt.s32.totalorder %s32, 1
      %s417 = scalar_select %p416, %s32, 1
      %s418 = smul.addr %s417, 2
      %s419 = smul.addr %s418, 8
      %s420 = scalar_lea.vmem %s2, %s419
      %s421 = sld [smem:[#allocation4 + %s32]]
      %p422 = scmp.lt.s32.totalorder %s421, 1
      %s423 = scalar_select %p422, %s421, 1
      %p424 = scmp.lt.s32.totalorder %s33, 0
      %s425 = scalar_select %p424, %s33, 0
      %s426 = sadd.s32 %s425, %s423
      %s427 = smul.addr %s426, 4
      %s428 = scalar_lea.vmem %s3, %s427
      %s429 = sld [smem:[#allocation4 + %s32]]
      %s430 = sld [smem:[#allocation4 + %s32]]
      %p431 = scmp.lt.s32.totalorder %s430, 1
      %s432 = scalar_select %p431, %s430, 1
      %p433 = scmp.lt.s32.totalorder %s33, 0
      %s434 = scalar_select %p433, %s33, 0
      %s435 = smul.addr %s432, 84
      %s436 = sadd.s32 %s434, %s435
      %s437 = smul.addr %s436, 4
      %s438 = scalar_lea.vmem %s4, %s437
      %s439 = sld [smem:[#allocation4 + %s32]]
      %s440 = sld [smem:[#allocation4 + %s32]]
      %p441 = scmp.lt.s32.totalorder %s440, 1
      %s442 = scalar_select %p441, %s440, 1
      %p443 = scmp.lt.s32.totalorder %s33, 0
      %s444 = scalar_select %p443, %s33, 0
      %s445 = smul.addr %s442, 3
      %s446 = sadd.s32 %s444, %s445
      %s447 = smul.addr %s446, 8
      %s448 = scalar_lea.vmem %s5, %s447
      %s449 = sld [smem:[#allocation4 + %s32]]
      %s450 = smul.u32 16, %s33
      %p451 = scmp.lt.s32.totalorder %s450, 15
      %s452 = scalar_select %p451, %s450, 15
      %s453 = smul.addr %s452, 8
      %s454 = scalar_lea.vmem %s6, %s453
      %s455 = smul.u32 16, %s33
      %p456 = scmp.lt.s32.totalorder %s32, 1
      %s457 = scalar_select %p456, %s32, 1
      %p458 = scmp.lt.s32.totalorder %s33, 0
      %s459 = scalar_select %p458, %s33, 0
      %s460 = sadd.s32 %s459, %s457
      %s461 = smul.addr %s460, 4
      %s462 = scalar_lea.vmem %s7, %s461
      %p463 = scmp.lt.s32.totalorder %s32, 1
      %s464 = scalar_select %p463, %s32, 1
      %s465 = smul.addr %s464, 4
      %s466 = scalar_lea.vmem %s8, %s465
      %v468 = vld [vmem:[%s415] sm:$0x3]
      %v469 = vld [vmem:[%s428] sm:$0x1]
      %v470 = vld [vmem:[%s438] sm:$0xf]
      %v471 = vld [vmem:[%s438 + $0x4] sm:$0xf]
      %v472 = vld [vmem:[%s438 + $0x8] sm:$0xf]
      %v473 = vld [vmem:[%s438 + $0xc] sm:$0xf]
      %v474 = vld [vmem:[%s438 + $0x10] sm:$0xf]
      %v475 = vld [vmem:[%s438 + $0x14] sm:$0xf]
      %v476 = vld [vmem:[%s438 + $0x18] sm:$0xf]
      %v477 = vld [vmem:[%s438 + $0x1c] sm:$0xf]
      %v478 = vld [vmem:[%s438 + $0x20] sm:$0xf]
      %v479 = vld [vmem:[%s438 + $0x24] sm:$0xf]
      %v480 = vld [vmem:[%s438 + $0x28] sm:$0xf]
      %v481 = vld [vmem:[%s438 + $0x2c] sm:$0xf]
      %v482 = vld [vmem:[%s438 + $0x30] sm:$0xf]
      %v483 = vld [vmem:[%s438 + $0x34] sm:$0xf]
      %v484 = vld [vmem:[%s438 + $0x38] sm:$0xf]
      %v485 = vld [vmem:[%s438 + $0x3c] sm:$0xf]
      %v486 = vld [vmem:[%s438 + $0x40] sm:$0xf]
      %v487 = vld [vmem:[%s438 + $0x44] sm:$0xf]
      %v488 = vld [vmem:[%s438 + $0x48] sm:$0xf]
      %v489 = vld [vmem:[%s438 + $0x4c] sm:$0xf]
      %v490 = vld [vmem:[%s438 + $0x50] sm:$0xf]
      %v491 = vld [vmem:[%s438 + $0x54] sm:$0xf]
      %v492 = vld [vmem:[%s438 + $0x58] sm:$0xf]
      %v493 = vld [vmem:[%s438 + $0x5c] sm:$0xf]
      %v494 = vld [vmem:[%s438 + $0x60] sm:$0xf]
      %v495 = vld [vmem:[%s438 + $0x64] sm:$0xf]
      %v496 = vld [vmem:[%s438 + $0x68] sm:$0xf]
      %v497 = vld [vmem:[%s438 + $0x6c] sm:$0x1]
      %499 = vst [vmem:[#allocation1] ss:$9 sm:$0xff] %v468
      %v500 = vld [vmem:[#allocation1] sm:$0xff]
      %v501 = vld [vmem:[#allocation1 + $0x9] sm:$0xff]
      %v531 = vunpack.c.l.b16 %v470
      %v532 = vunpack.c.l.b16 %v471
      %v533 = vunpack.c.l.b16 %v472
      %v534 = vunpack.c.l.b16 %v473
      %v535 = vunpack.c.l.b16 %v474
      %v536 = vunpack.c.l.b16 %v475
      %v537 = vunpack.c.l.b16 %v476
      %v538 = vunpack.c.l.b16 %v477
      %v539 = vunpack.c.l.b16 %v478
      %v540 = vunpack.c.l.b16 %v479
      %v541 = vunpack.c.l.b16 %v480
      %v542 = vunpack.c.l.b16 %v481
      %v543 = vunpack.c.l.b16 %v482
      %v544 = vunpack.c.l.b16 %v483
      %v545 = vunpack.c.l.b16 %v484
      %v546 = vunpack.c.l.b16 %v485
      %v547 = vunpack.c.l.b16 %v486
      %v548 = vunpack.c.l.b16 %v487
      %v549 = vunpack.c.l.b16 %v488
      %v550 = vunpack.c.l.b16 %v489
      %v551 = vunpack.c.l.b16 %v490
      %v552 = vunpack.c.l.b16 %v491
      %v553 = vunpack.c.l.b16 %v492
      %v554 = vunpack.c.l.b16 %v493
      %v555 = vunpack.c.l.b16 %v494
      %v556 = vunpack.c.l.b16 %v495
      %v557 = vunpack.c.l.b16 %v496
      %v558 = vunpack.c.l.b16 %v497
      %v559 = vpack.c.b16 %v532, %v531
      %v560 = vpack.c.b16 %v534, %v533
      %v561 = vpack.c.b16 %v536, %v535
      %v562 = vpack.c.b16 %v538, %v537
      %v563 = vpack.c.b16 %v540, %v539
      %v564 = vpack.c.b16 %v542, %v541
      %v565 = vpack.c.b16 %v544, %v543
      %v566 = vpack.c.b16 %v546, %v545
      %v567 = vpack.c.b16 %v548, %v547
      %v568 = vpack.c.b16 %v550, %v549
      %v569 = vpack.c.b16 %v552, %v551
      %v570 = vpack.c.b16 %v554, %v553
      %v571 = vpack.c.b16 %v556, %v555
      %v572 = vpack.c.b16 %v558, %v557
      %vm586 = vcmask 728064
      %v587 = vsel %vm586, %v501, 0
      %vm589 = vcmask 1043456
      %vm590 = vcmask 1044480
      %v591 = vsel %vm589, 4294967295, 65535
      %v592 = vsel %vm590, %v591, 0
      %v594 = vand.u32 %v572, %v592
      %596 = vmatpush.bf16.msra.mxu0 %v566
      %597 = vmatpush.bf16.msra.mxu0 %v565
      %598 = vmatpush.bf16.msra.mxu0 %v564
      %599 = vmatpush.bf16.msra.mxu0 %v563
      %600 = vmatpush.bf16.msra.mxu0 %v562
      %601 = vmatpush.bf16.msra.mxu0 %v561
      %602 = vmatpush.bf16.msra.mxu0 %v560
      %603 = vmatpush.bf16.msra.mxu0 %v559
      %604 = vmatmul.bf16.gmra.mxu0 %v500
      %v605 = vpop.f32.mrf.mxu0
      %v606 = vadd.f32 0.0, %v605
      %v607 = vpop.f32.mrf.mxu0
      %608 = vdwg.mxu0
      %609 = vmatpush.bf16.msra.mxu0 0
      %610 = vmatpush.bf16.msra.mxu0 0
      %611 = vmatpush.bf16.msra.mxu0 %v594
      %612 = vmatpush.bf16.msra.mxu0 %v571
      %613 = vmatpush.bf16.msra.mxu0 %v570
      %614 = vmatpush.bf16.msra.mxu0 %v569
      %615 = vmatpush.bf16.msra.mxu0 %v568
      %616 = vmatpush.bf16.msra.mxu0 %v567
      %617 = vmatmul.bf16.gmra.mxu0 %v587
      %v618 = vpop.f32.mrf.mxu0
      %v619 = vadd.f32 %v606, %v618
      %v620 = vpop.f32.mrf.mxu0
      %621 = vdwg.mxu0
      %v622 = vadd.f32 %v469, %v619
      %623 = vst [vmem:[#allocation2] sm:$0x1] %v622
      %v624 = vld [vmem:[%s428 + $0x1] sm:$0x1]
      %s625 = scalar_lea.vmem %s438, 112
      %v626 = vld [vmem:[%s625] sm:$0xf]
      %v627 = vld [vmem:[%s625 + $0x4] sm:$0xf]
      %v628 = vld [vmem:[%s625 + $0x8] sm:$0xf]
      %v629 = vld [vmem:[%s625 + $0xc] sm:$0xf]
      %v630 = vld [vmem:[%s625 + $0x10] sm:$0xf]
      %v631 = vld [vmem:[%s625 + $0x14] sm:$0xf]
      %v632 = vld [vmem:[%s625 + $0x18] sm:$0xf]
      %v633 = vld [vmem:[%s625 + $0x1c] sm:$0xf]
      %v634 = vld [vmem:[%s625 + $0x20] sm:$0xf]
      %v635 = vld [vmem:[%s625 + $0x24] sm:$0xf]
      %v636 = vld [vmem:[%s625 + $0x28] sm:$0xf]
      %v637 = vld [vmem:[%s625 + $0x2c] sm:$0xf]
      %v638 = vld [vmem:[%s625 + $0x30] sm:$0xf]
      %v639 = vld [vmem:[%s625 + $0x34] sm:$0xf]
      %v640 = vld [vmem:[%s625 + $0x38] sm:$0xf]
      %v641 = vld [vmem:[%s625 + $0x3c] sm:$0xf]
      %v642 = vld [vmem:[%s625 + $0x40] sm:$0xf]
      %v643 = vld [vmem:[%s625 + $0x44] sm:$0xf]
      %v644 = vld [vmem:[%s625 + $0x48] sm:$0xf]
      %v645 = vld [vmem:[%s625 + $0x4c] sm:$0xf]
      %v646 = vld [vmem:[%s625 + $0x50] sm:$0xf]
      %v647 = vld [vmem:[%s625 + $0x54] sm:$0xf]
      %v648 = vld [vmem:[%s625 + $0x58] sm:$0xf]
      %v649 = vld [vmem:[%s625 + $0x5c] sm:$0xf]
      %v650 = vld [vmem:[%s625 + $0x60] sm:$0xf]
      %v651 = vld [vmem:[%s625 + $0x64] sm:$0xf]
      %v652 = vld [vmem:[%s625 + $0x68] sm:$0xf]
      %v653 = vld [vmem:[%s625 + $0x6c] sm:$0x1]
      %654 = vst [vmem:[#allocation1] ss:$9 sm:$0xff] %v468
      %v655 = vld [vmem:[#allocation1] sm:$0xff]
      %v656 = vld [vmem:[#allocation1 + $0x9] sm:$0xff]
      %v686 = vunpack.c.l.b16 %v626
      %v687 = vunpack.c.l.b16 %v627
      %v688 = vunpack.c.l.b16 %v628
      %v689 = vunpack.c.l.b16 %v629
      %v690 = vunpack.c.l.b16 %v630
      %v691 = vunpack.c.l.b16 %v631
      %v692 = vunpack.c.l.b16 %v632
      %v693 = vunpack.c.l.b16 %v633
      %v694 = vunpack.c.l.b16 %v634
      %v695 = vunpack.c.l.b16 %v635
      %v696 = vunpack.c.l.b16 %v636
      %v697 = vunpack.c.l.b16 %v637
      %v698 = vunpack.c.l.b16 %v638
      %v699 = vunpack.c.l.b16 %v639
      %v700 = vunpack.c.l.b16 %v640
      %v701 = vunpack.c.l.b16 %v641
      %v702 = vunpack.c.l.b16 %v642
      %v703 = vunpack.c.l.b16 %v643
      %v704 = vunpack.c.l.b16 %v644
      %v705 = vunpack.c.l.b16 %v645
      %v706 = vunpack.c.l.b16 %v646
      %v707 = vunpack.c.l.b16 %v647
      %v708 = vunpack.c.l.b16 %v648
      %v709 = vunpack.c.l.b16 %v649
      %v710 = vunpack.c.l.b16 %v650
      %v711 = vunpack.c.l.b16 %v651
      %v712 = vunpack.c.l.b16 %v652
      %v713 = vunpack.c.l.b16 %v653
      %v714 = vpack.c.b16 %v687, %v686
      %v715 = vpack.c.b16 %v689, %v688
      %v716 = vpack.c.b16 %v691, %v690
      %v717 = vpack.c.b16 %v693, %v692
      %v718 = vpack.c.b16 %v695, %v694
      %v719 = vpack.c.b16 %v697, %v696
      %v720 = vpack.c.b16 %v699, %v698
      %v721 = vpack.c.b16 %v701, %v700
      %v722 = vpack.c.b16 %v703, %v702
      %v723 = vpack.c.b16 %v705, %v704
      %v724 = vpack.c.b16 %v707, %v706
      %v725 = vpack.c.b16 %v709, %v708
      %v726 = vpack.c.b16 %v711, %v710
      %v727 = vpack.c.b16 %v713, %v712
      %v741 = vsel %vm586, %v656, 0
      %v744 = vand.u32 %v727, %v592
      %746 = vmatpush.bf16.msra.mxu0 %v721
      %747 = vmatpush.bf16.msra.mxu0 %v720
      %748 = vmatpush.bf16.msra.mxu0 %v719
      %749 = vmatpush.bf16.msra.mxu0 %v718
      %750 = vmatpush.bf16.msra.mxu0 %v717
      %751 = vmatpush.bf16.msra.mxu0 %v716
      %752 = vmatpush.bf16.msra.mxu0 %v715
      %753 = vmatpush.bf16.msra.mxu0 %v714
      %754 = vmatmul.bf16.gmra.mxu0 %v655
      %v755 = vpop.f32.mrf.mxu0
      %v756 = vadd.f32 0.0, %v755
      %v757 = vpop.f32.mrf.mxu0
      %758 = vdwg.mxu0
      %759 = vmatpush.bf16.msra.mxu0 0
      %760 = vmatpush.bf16.msra.mxu0 0
      %761 = vmatpush.bf16.msra.mxu0 %v744
      %762 = vmatpush.bf16.msra.mxu0 %v726
      %763 = vmatpush.bf16.msra.mxu0 %v725
      %764 = vmatpush.bf16.msra.mxu0 %v724
      %765 = vmatpush.bf16.msra.mxu0 %v723
      %766 = vmatpush.bf16.msra.mxu0 %v722
      %767 = vmatmul.bf16.gmra.mxu0 %v741
      %v768 = vpop.f32.mrf.mxu0
      %v769 = vadd.f32 %v756, %v768
      %v770 = vpop.f32.mrf.mxu0
      %771 = vdwg.mxu0
      %v772 = vadd.f32 %v624, %v769
      %773 = vst [vmem:[#allocation2 + $0x1] sm:$0x1] %v772
      %v774 = vld [vmem:[%s428 + $0x2] sm:$0x1]
      %s775 = scalar_lea.vmem %s438, 224
      %v776 = vld [vmem:[%s775] sm:$0xf]
      %v777 = vld [vmem:[%s775 + $0x4] sm:$0xf]
      %v778 = vld [vmem:[%s775 + $0x8] sm:$0xf]
      %v779 = vld [vmem:[%s775 + $0xc] sm:$0xf]
      %v780 = vld [vmem:[%s775 + $0x10] sm:$0xf]
      %v781 = vld [vmem:[%s775 + $0x14] sm:$0xf]
      %v782 = vld [vmem:[%s775 + $0x18] sm:$0xf]
      %v783 = vld [vmem:[%s775 + $0x1c] sm:$0xf]
      %v784 = vld [vmem:[%s775 + $0x20] sm:$0xf]
      %v785 = vld [vmem:[%s775 + $0x24] sm:$0xf]
      %v786 = vld [vmem:[%s775 + $0x28] sm:$0xf]
      %v787 = vld [vmem:[%s775 + $0x2c] sm:$0xf]
      %v788 = vld [vmem:[%s775 + $0x30] sm:$0xf]
      %v789 = vld [vmem:[%s775 + $0x34] sm:$0xf]
      %v790 = vld [vmem:[%s775 + $0x38] sm:$0xf]
      %v791 = vld [vmem:[%s775 + $0x3c] sm:$0xf]
      %v792 = vld [vmem:[%s775 + $0x40] sm:$0xf]
      %v793 = vld [vmem:[%s775 + $0x44] sm:$0xf]
      %v794 = vld [vmem:[%s775 + $0x48] sm:$0xf]
      %v795 = vld [vmem:[%s775 + $0x4c] sm:$0xf]
      %v796 = vld [vmem:[%s775 + $0x50] sm:$0xf]
      %v797 = vld [vmem:[%s775 + $0x54] sm:$0xf]
      %v798 = vld [vmem:[%s775 + $0x58] sm:$0xf]
      %v799 = vld [vmem:[%s775 + $0x5c] sm:$0xf]
      %v800 = vld [vmem:[%s775 + $0x60] sm:$0xf]
      %v801 = vld [vmem:[%s775 + $0x64] sm:$0xf]
      %v802 = vld [vmem:[%s775 + $0x68] sm:$0xf]
      %v803 = vld [vmem:[%s775 + $0x6c] sm:$0x1]
      %804 = vst [vmem:[#allocation1] ss:$9 sm:$0xff] %v468
      %v805 = vld [vmem:[#allocation1] sm:$0xff]
      %v806 = vld [vmem:[#allocation1 + $0x9] sm:$0xff]
      %v836 = vunpack.c.l.b16 %v776
      %v837 = vunpack.c.l.b16 %v777
      %v838 = vunpack.c.l.b16 %v778
      %v839 = vunpack.c.l.b16 %v779
      %v840 = vunpack.c.l.b16 %v780
      %v841 = vunpack.c.l.b16 %v781
      %v842 = vunpack.c.l.b16 %v782
      %v843 = vunpack.c.l.b16 %v783
      %v844 = vunpack.c.l.b16 %v784
      %v845 = vunpack.c.l.b16 %v785
      %v846 = vunpack.c.l.b16 %v786
      %v847 = vunpack.c.l.b16 %v787
      %v848 = vunpack.c.l.b16 %v788
      %v849 = vunpack.c.l.b16 %v789
      %v850 = vunpack.c.l.b16 %v790
      %v851 = vunpack.c.l.b16 %v791
      %v852 = vunpack.c.l.b16 %v792
      %v853 = vunpack.c.l.b16 %v793
      %v854 = vunpack.c.l.b16 %v794
      %v855 = vunpack.c.l.b16 %v795
      %v856 = vunpack.c.l.b16 %v796
      %v857 = vunpack.c.l.b16 %v797
      %v858 = vunpack.c.l.b16 %v798
      %v859 = vunpack.c.l.b16 %v799
      %v860 = vunpack.c.l.b16 %v800
      %v861 = vunpack.c.l.b16 %v801
      %v862 = vunpack.c.l.b16 %v802
      %v863 = vunpack.c.l.b16 %v803
      %v864 = vpack.c.b16 %v837, %v836
      %v865 = vpack.c.b16 %v839, %v838
      %v866 = vpack.c.b16 %v841, %v840
      %v867 = vpack.c.b16 %v843, %v842
      %v868 = vpack.c.b16 %v845, %v844
      %v869 = vpack.c.b16 %v847, %v846
      %v870 = vpack.c.b16 %v849, %v848
      %v871 = vpack.c.b16 %v851, %v850
      %v872 = vpack.c.b16 %v853, %v852
      %v873 = vpack.c.b16 %v855, %v854
      %v874 = vpack.c.b16 %v857, %v856
      %v875 = vpack.c.b16 %v859, %v858
      %v876 = vpack.c.b16 %v861, %v860
      %v877 = vpack.c.b16 %v863, %v862
      %v891 = vsel %vm586, %v806, 0
      %v894 = vand.u32 %v877, %v592
      %896 = vmatpush.bf16.msra.mxu0 %v871
      %897 = vmatpush.bf16.msra.mxu0 %v870
      %898 = vmatpush.bf16.msra.mxu0 %v869
      %899 = vmatpush.bf16.msra.mxu0 %v868
      %900 = vmatpush.bf16.msra.mxu0 %v867
      %901 = vmatpush.bf16.msra.mxu0 %v866
      %902 = vmatpush.bf16.msra.mxu0 %v865
      %903 = vmatpush.bf16.msra.mxu0 %v864
      %904 = vmatmul.bf16.gmra.mxu0 %v805
      %v905 = vpop.f32.mrf.mxu0
      %v906 = vadd.f32 0.0, %v905
      %v907 = vpop.f32.mrf.mxu0
      %908 = vdwg.mxu0
      %909 = vmatpush.bf16.msra.mxu0 0
      %910 = vmatpush.bf16.msra.mxu0 0
      %911 = vmatpush.bf16.msra.mxu0 %v894
      %912 = vmatpush.bf16.msra.mxu0 %v876
      %913 = vmatpush.bf16.msra.mxu0 %v875
      %914 = vmatpush.bf16.msra.mxu0 %v874
      %915 = vmatpush.bf16.msra.mxu0 %v873
      %916 = vmatpush.bf16.msra.mxu0 %v872
      %917 = vmatmul.bf16.gmra.mxu0 %v891
      %v918 = vpop.f32.mrf.mxu0
      %v919 = vadd.f32 %v906, %v918
      %v920 = vpop.f32.mrf.mxu0
      %921 = vdwg.mxu0
      %v922 = vadd.f32 %v774, %v919
      %923 = vst [vmem:[#allocation2 + $0x2] sm:$0x1] %v922
      %v924 = vld [vmem:[#allocation2] sm:$0x7]
      %v925 = vld [vmem:[%s420] sm:$0xff]
      %v926 = vld [vmem:[%s420 + $0x8] sm:$0xf]
      %v927 = vld [vmem:[%s448] sm:$0xff]
      %v928 = vld [vmem:[%s448 + $0x8] sm:$0xff]
      %v929 = vld [vmem:[%s448 + $0x10] sm:$0xff]
      %vm930 = vcmask 195584
      %v932 = vsel %vm930, %v925, 0
      %v935 = vsel %vm930, %v926, 0
      %937 = vmatpush.msra.mxu0 0.0
      %938 = vmatpush.msra.mxu0 0.0
      %939 = vmatpush.msra.mxu0 0.0
      %940 = vmatpush.msra.mxu0 0.0
      %941 = vmatpush.msra.mxu0 0.0
      %942 = vmatpush.msra.mxu0 0.0
      %943 = vmatpush.msra.mxu0 0.0
      %944 = vmatpush.msra.mxu0 0.0
      %945 = vmatpush.msra.mxu0 0.0
      %946 = vmatpush.msra.mxu0 0.0
      %947 = vmatpush.msra.mxu0 0.0
      %948 = vmatpush.msra.mxu0 0.0
      %949 = vmatpush.msra.mxu0 0.0
      %950 = vmatpush.msra.mxu0 %v929
      %951 = vmatpush.msra.mxu0 %v928
      %952 = vmatpush.msra.mxu0 %v927
      %953 = vmatmul.f32.gmra.mxu0 %v932
      %v954 = vpop.f32.mrf.mxu0
      %v955 = vadd.f32 0.0, %v954
      %956 = vmatmul.f32.gmra.mxu0 %v935
      %v957 = vpop.f32.mrf.mxu0
      %v958 = vadd.f32 0.0, %v957
      %959 = vdwg.mxu0
      %v960 = vperm.slane %v924, 0
      %v961 = vmul.f32 %v955, %v960
      %v962 = vperm.slane %v924, 1
      %v963 = vmul.f32 %v955, %v962
      %v965 = vrot.slane %v963, 3
      %v967 = vadd.f32 %v961, %v965
      %v968 = vperm.slane %v924, 2
      %v969 = vmul.f32 %v955, %v968
      %v970 = vmul.f32 %v958, %v968
      %vm973 = vcmask 1041408
      %v974 = vrot.slane %v969, 6
      %v975 = vrot.slane %v970, 6
      %v976 = vsel %vm973, %v974, %v975
      %v978 = vadd.f32 %v967, %v976
      %v980 = vrot.slane %v958, 1
      %v982 = vadd.f32 %v978, %v980
      %983 = vst [vmem:[%s462] sm:$0x7] %v982
      %p984 = scmp.eq.s32.totalorder %s33, 0
      // Predicated region
      $region45: #{_lambda_.1} parent=43 // pred_check
        %p985 = pneg %p984
      $region46: #{_lambda_.1} parent=43 // pred_check_branch
        %987 = sbr.rel (%p985) target = $region48
      $region47: #{_lambda_.1} parent=43 // pred_region
        %vm988 = vcmask 362496
        %989 = vst.msk [vmem:[%s466] sm:$0x7] %vm988, 0.0
      $region48: #{_lambda_.1} parent=43 // pred_fallthru
        _
      %v990 = vld [vmem:[%s466] sm:$0x7]
      %v991 = vld [vmem:[%s454] sm:$0xff]
      %v992 = vld [vmem:[%s454 + $0x8] sm:$0xff]
      %v993 = vld [vmem:[%s454 + $0x10] sm:$0xff]
      %v994 = vld [vmem:[%s454 + $0x18] sm:$0xff]
      %v995 = vld [vmem:[%s454 + $0x20] sm:$0xff]
      %v996 = vld [vmem:[%s454 + $0x28] sm:$0xff]
      %v997 = vld [vmem:[%s454 + $0x30] sm:$0xff]
      %v998 = vld [vmem:[%s454 + $0x38] sm:$0xff]
      %v999 = vld [vmem:[%s454 + $0x40] sm:$0xff]
      %v1000 = vld [vmem:[%s454 + $0x48] sm:$0xff]
      %v1001 = vld [vmem:[%s454 + $0x50] sm:$0xff]
      %v1002 = vld [vmem:[%s454 + $0x58] sm:$0xff]
      %v1003 = vld [vmem:[%s454 + $0x60] sm:$0xff]
      %v1004 = vld [vmem:[%s454 + $0x68] sm:$0xff]
      %v1005 = vld [vmem:[%s454 + $0x70] sm:$0xff]
      %v1006 = vld [vmem:[%s454 + $0x78] sm:$0xff]
      %1007 = vmatpush.msra.mxu0 %v1006
      %1008 = vmatpush.msra.mxu0 %v1005
      %1009 = vmatpush.msra.mxu0 %v1004
      %1010 = vmatpush.msra.mxu0 %v1003
      %1011 = vmatpush.msra.mxu0 %v1002
      %1012 = vmatpush.msra.mxu0 %v1001
      %1013 = vmatpush.msra.mxu0 %v1000
      %1014 = vmatpush.msra.mxu0 %v999
      %1015 = vmatpush.msra.mxu0 %v998
      %1016 = vmatpush.msra.mxu0 %v997
      %1017 = vmatpush.msra.mxu0 %v996
      %1018 = vmatpush.msra.mxu0 %v995
      %1019 = vmatpush.msra.mxu0 %v994
      %1020 = vmatpush.msra.mxu0 %v993
      %1021 = vmatpush.msra.mxu0 %v992
      %1022 = vmatpush.msra.mxu0 %v991
      %1023 = vmatmul.f32.gmra.mxu0 %v982
      %v1024 = vpop.f32.mrf.mxu0
      %v1025 = vadd.f32 0.0, %v1024
      %1026 = vdwg.mxu0
      %v1027 = vadd.f32 %v990, %v1025
      %vm1028 = vcmask 362496
      %1029 = vst.msk [vmem:[%s466] sm:$0x7] %vm1028, %v1027
      %p1030 = scmp.lt.s32.totalorder %s32, 1
      %s1031 = scalar_select %p1030, %s32, 1
      %p1032 = scmp.lt.s32.totalorder %s33, 0
      %s1033 = scalar_select %p1032, %s33, 0
      %s1034 = sadd.s32 %s1033, %s1031
      %s1035 = smul.addr %s1034, 4
      %s1036 = scalar_lea.vmem %s7, %s1035
      %p1037 = scmp.lt.s32.totalorder %s32, 1
      %s1038 = scalar_select %p1037, %s32, 1
      %s1039 = smul.addr %s1038, 4
      %s1040 = scalar_lea.vmem %s8, %s1039
      // Predicated region
      $region49: #{_lambda_.1} parent=43 // pred_check
        %p1041 = pneg %p228
      $region50: #{_lambda_.1} parent=43 // pred_check_branch
        %1043 = sbr.rel (%p1041) target = $region52
      $region51: #{_lambda_.1} parent=43 // pred_region
        _
      $region52: #{_lambda_.1} parent=43 // pred_fallthru
        _
      // Predicated region
      $region53: #{_lambda_.1} parent=43 // pred_check
        %p1044 = pneg %p254
      $region54: #{_lambda_.1} parent=43 // pred_check_branch
        %1046 = sbr.rel (%p1044) target = $region56
      $region55: #{_lambda_.1} parent=43 // pred_region
        _
      $region56: #{_lambda_.1} parent=43 // pred_fallthru
        _
    $region44: #{_lambda_.1} parent=5 // pred_fallthru
      _
    %p1047 = scmp.le.s32.totalorder 2, %s23
    // Predicated region
    $region57: #{_lambda_.1} parent=5 // pred_check
      %p1048 = pneg %p1047
    $region58: #{_lambda_.1} parent=5 // pred_check_branch
      %1050 = sbr.rel (%p1048) target = $region60
    $region59: #{_lambda_.1} parent=5 // pred_region
      %s1051 = ssub.s32 %s23, 2
      // Predicated region
      $region61: #{_lambda_.1} parent=59 // pred_check
        %p1052 = pneg %p234
      $region62: #{_lambda_.1} parent=59 // pred_check_branch
        %1054 = sbr.rel (%p1052) target = $region64
      $region63: #{_lambda_.1} parent=59 // pred_region
        %p1055 = scmp.lt.s32.totalorder %s34, 1
        %s1056 = scalar_select %p1055, %s34, 1
        %p1057 = scmp.lt.s32.totalorder %s35, 0
        %s1058 = scalar_select %p1057, %s35, 0
        %s1059 = sadd.s32 %s1058, %s1056
        %s1060 = smul.addr %s1059, 4
        %s1061 = scalar_lea.vmem %s7, %s1060
      $region64: #{_lambda_.1} parent=59 // pred_fallthru
        _
      // Predicated region
      $region65: #{_lambda_.1} parent=59 // pred_check
        %p1062 = pneg %p260
      $region66: #{_lambda_.1} parent=59 // pred_check_branch
        %1064 = sbr.rel (%p1062) target = $region68
      $region67: #{_lambda_.1} parent=59 // pred_region
        %p1065 = scmp.lt.s32.totalorder %s34, 1
        %s1066 = scalar_select %p1065, %s34, 1
        %s1067 = smul.addr %s1066, 4
        %s1068 = scalar_lea.vmem %s8, %s1067
      $region68: #{_lambda_.1} parent=59 // pred_fallthru
        _
    $region60: #{_lambda_.1} parent=5 // pred_fallthru
      _
  $region6: #{_lambda_.1} parent=0 // loop_footer
    %s27 = sadd.s32 1, %s23
  $region7: #{_lambda_.1} parent=0 // loop_footer_branch
    %22 = sbr.rel target = $region3
  $region8: #{_lambda_.1} parent=0 // loop_exit
    _

</llo_original>
